<compile_context>
chip_gen: v6e
topology: v6e:2x2x1
jax: 0.10.0
libtpu: 0.0.40
codegen_flags: <defaults>
</compile_context>

<pallas_src>
import functools

import jax
import jax.numpy as jnp
import numpy as np
from jax.experimental import pallas as pl
from jax.experimental.pallas import tpu as pltpu

# ---- static hyper-parameters (mirror the torch module's __init__ args) -----
NUM_SUPPORTS = 2          # 'dual_random_walk'
INPUT_DIM = 4
HID_DIM = 12
NUM_NODES = 16
MAX_DIFFUSION_STEP = 2
OUTPUT_DIM = 32
BIAS_START = 0.1

INPUT_SIZE = INPUT_DIM + HID_DIM                       # F = 16
NUM_MATRICES = NUM_SUPPORTS * MAX_DIFFUSION_STEP + 1   # M = 5

_HP = jax.lax.Precision.HIGHEST


def _round_up(x, m):
    return ((x + m - 1) // m) * m


# ------------------------------- kernel -------------------------------------
def _dgc_kernel(x_ref, g_ref, b_ref, o_ref):
    # x_ref: (TB, N*F)   g_ref: (N*F, N*out)   b_ref: (1, N*out)   o_ref: (TB, N*out)
    acc = jnp.dot(x_ref[...], g_ref[...], preferred_element_type=jnp.float32)
    o_ref[...] = (acc + b_ref[...]).astype(o_ref.dtype)


# --------------------- batch-independent operator folding -------------------
def _diffusion_operators(supports, max_step):
    """T_m such that the m-th diffusion matrix is T_m @ X.

    Faithful port of the torch loop applied to the identity operator — note the
    torch code reassigns x0 inside the inner loop, so the seed for each
    subsequent support is the previous support's last x1; we reproduce that.
    """
    N = supports.shape[-1]
    t0 = jnp.eye(N, dtype=supports.dtype)
    ops = [t0]
    if max_step > 0:
        for s in range(supports.shape[0]):
            A = supports[s]
            t1 = jnp.dot(A, t0, precision=_HP)
            ops.append(t1)
            for _ in range(2, max_step + 1):
                t2 = 2.0 * jnp.dot(A, t1, precision=_HP) - t0
                ops.append(t2)
                t1, t0 = t2, t1          # carries into the next support (as in torch)
    return jnp.stack(ops, axis=0)        # (M, N, N)


def _combined_operator(supports, weight, *, num_nodes, max_step, output_dim):
    """G[(n_src*F + f), (n_dst*out + o)] = sum_m T_m[n_dst, n_src] * W_m[f, o]."""
    S = supports.shape[0]
    M = S * max_step + 1
    F = weight.shape[0] // M
    T = _diffusion_operators(supports, max_step)                    # (M, N, N)
    # torch's (B,N,F,M) reshape makes weight rows f*M + m  ->  W_m = w.reshape(F,M,out)[:, m]
    Wm = weight.reshape(F, M, output_dim).transpose(1, 0, 2)        # (M, F, out)
    G = jnp.einsum('mdn,mfo->nfdo', T, Wm, precision=_HP)           # (n_src, f, n_dst, o)
    return G.reshape(num_nodes * F, num_nodes * output_dim)         # (N*F, N*out)


def _flatten_inputs_state(inputs, state, num_nodes):
    B = inputs.shape[0]
    x_in = inputs.reshape(B, num_nodes, -1)
    x_st = state.reshape(B, num_nodes, -1)
    x0 = jnp.concatenate([x_in, x_st], axis=2)                      # (B, N, F)
    return x0.reshape(B, num_nodes * x0.shape[-1])                  # (B, N*F)


# ------------------------------- wrapper -------------------------------------
@functools.partial(jax.jit,
                   static_argnames=("num_nodes", "max_step", "output_dim", "batch_tile"))
def diffusion_graph_conv(supports, inputs, state, weight, biases, *,
                         num_nodes, max_step, output_dim, batch_tile=128):
    # TODO(synk): torch builds sparse support tensors; they are used as dense
    # (S, N, N) matrices here (identical math).
    B = inputs.shape[0]
    x_flat = _flatten_inputs_state(inputs, state, num_nodes)        # (B, N*F)
    NF = x_flat.shape[1]
    NOUT = num_nodes * output_dim

    # Batch-independent precompute (done once per call, O(1) in batch).
    G = _combined_operator(supports, weight, num_nodes=num_nodes,
                           max_step=max_step, output_dim=output_dim)   # (NF, NOUT)
    bias_row = jnp.tile(biases, num_nodes).reshape(1, NOUT)            # (1, NOUT)

    # Batch tiling: TB rows per grid step (>= 8 for the (8,128) block rule).
    TB = min(batch_tile, _round_up(B, 8))
    B_pad = _round_up(B, TB)
    if B_pad != B:
        x_flat = jnp.pad(x_flat, ((0, B_pad - B), (0, 0)))

    out = pl.pallas_call(
        _dgc_kernel,
        out_shape=jax.ShapeDtypeStruct((B_pad, NOUT), x_flat.dtype),
        grid=(B_pad // TB,),
        in_specs=[
            pl.BlockSpec((TB, NF), lambda i: (i, 0)),
            pl.BlockSpec((NF, NOUT), lambda i: (0, 0)),     # resident in VMEM
            pl.BlockSpec((1, NOUT), lambda i: (0, 0)),      # resident in VMEM
        ],
        out_specs=pl.BlockSpec((TB, NOUT), lambda i: (i, 0)),  # lane-dense (512-wide)
        compiler_params=pltpu.CompilerParams(dimension_semantics=("parallel",)),
    )(x_flat, G, bias_row)

    return out[:B]


# ---------------------------- pure-JAX reference -----------------------------
def diffusion_graph_conv_ref(supports, inputs, state, weight, biases, *,
                             num_nodes, max_step, output_dim):
    """Line-by-line port of the torch forward (dense supports, f32 precision)."""
    B = inputs.shape[0]
    x_in = inputs.reshape(B, num_nodes, -1)
    x_st = state.reshape(B, num_nodes, -1)
    x0 = jnp.concatenate([x_in, x_st], axis=2)                      # (B, N, F)
    F = x0.shape[-1]
    xs = [x0]
    if max_step > 0:
        for s in range(supports.shape[0]):
            A = supports[s]
            x1 = jnp.einsum('nm,bmf->bnf', A, x0, precision=_HP)
            xs.append(x1)
            for _ in range(2, max_step + 1):
                x2 = 2.0 * jnp.einsum('nm,bmf->bnf', A, x1, precision=_HP) - x0
                xs.append(x2)
                x1, x0 = x2, x1          # same carry across supports as the torch code
    M = len(xs)
    x = jnp.stack(xs, axis=1)                                       # (B, M, N, F)
    x = jnp.transpose(x, (0, 2, 3, 1))                              # (B, N, F, M)
    x = x.reshape(B * num_nodes, F * M)
    x = jnp.dot(x, weight, precision=_HP) + biases
    return x.reshape(B, num_nodes * output_dim)


# ---------------------------------- main -------------------------------------
if __name__ == "__main__":
    key = jax.random.PRNGKey(0)
    k_w, k_in, k_st, k_s = jax.random.split(key, 4)

    B = 2
    # Parameters (xavier_normal_ with gain=1.414, constant bias, as in __init__).
    fan_in = INPUT_SIZE * NUM_MATRICES
    fan_out = OUTPUT_DIM
    std = 1.414 * float(np.sqrt(2.0 / (fan_in + fan_out)))
    weight = std * jax.random.normal(k_w, (fan_in, fan_out), dtype=jnp.float32)
    biases = jnp.full((OUTPUT_DIM,), BIAS_START, dtype=jnp.float32)

    # Inputs / state flattened per node, as the torch forward expects.
    inputs = jax.random.normal(k_in, (B, NUM_NODES * INPUT_DIM), dtype=jnp.float32)
    state = jax.random.normal(k_st, (B, NUM_NODES * HID_DIM), dtype=jnp.float32)

    # Dense "random walk" supports (forward & backward row-normalized adjacency).
    adj = jax.random.uniform(k_s, (NUM_NODES, NUM_NODES), dtype=jnp.float32)
    sup_fwd = adj / jnp.sum(adj, axis=1, keepdims=True)
    sup_bwd = adj.T / jnp.sum(adj.T, axis=1, keepdims=True)
    supports = jnp.stack([sup_fwd, sup_bwd], axis=0)                # (S, N, N)

    out = diffusion_graph_conv(
        supports, inputs, state, weight, biases,
        num_nodes=NUM_NODES, max_step=MAX_DIFFUSION_STEP, output_dim=OUTPUT_DIM)
    out = jax.block_until_ready(out)

    ref = diffusion_graph_conv_ref(
        supports, inputs, state, weight, biases,
        num_nodes=NUM_NODES, max_step=MAX_DIFFUSION_STEP, output_dim=OUTPUT_DIM)
    ref = jax.block_until_ready(ref)

    # 1) Algebra check (XLA vs XLA at full f32 precision): the folded combined
    #    operator reproduces the torch formulation exactly.
    x_flat = _flatten_inputs_state(inputs, state, NUM_NODES)
    G = _combined_operator(supports, weight, num_nodes=NUM_NODES,
                           max_step=MAX_DIFFUSION_STEP, output_dim=OUTPUT_DIM)
    ref_kron = jnp.dot(x_flat, G, precision=_HP) + jnp.tile(biases, NUM_NODES)[None, :]
    np.testing.assert_allclose(np.asarray(ref_kron), np.asarray(ref),
                               rtol=1e-4, atol=1e-4)

    # 2) End-to-end kernel check.  Tolerance leaves headroom for the MXU's
    #    default f32 matmul precision (bf16 passes) on a contraction that is
    #    factored differently from the reference; the math itself is verified
    #    tightly by check (1).
    assert out.shape == (B, NUM_NODES * OUTPUT_DIM)
    np.testing.assert_allclose(np.asarray(out), np.asarray(ref),
                               rtol=2e-2, atol=2e-2)
    print("KERNEL_OK")
</pallas_src>

<mosaic_0001>
module attributes {stable_mosaic.version = 11 : i64} {
  func.func @_dgc_kernel(%arg0: i32, %arg1: memref<8x256xf32, #tpu.memory_space<vmem>>, %arg2: memref<256x512xf32, #tpu.memory_space<vmem>>, %arg3: memref<1x512xf32, #tpu.memory_space<vmem>>, %arg4: memref<8x512xf32, #tpu.memory_space<vmem>>) attributes {dimension_semantics = [#tpu.dimension_semantics<parallel>], iteration_bounds = array<i64: 1>, scalar_prefetch = 0 : i64, scratch_operands = 0 : i64, tpu.core_type = #tpu.core_type<tc>, window_params = [{transform_indices = @transform_0, window_bounds = array<i64: 8, 256>}, {pipeline_mode = #tpu.pipeline_mode<synchronous>, transform_indices = @transform_1, window_bounds = array<i64: 256, 512>}, {pipeline_mode = #tpu.pipeline_mode<synchronous>, transform_indices = @transform_2, window_bounds = array<i64: 1, 512>}, {transform_indices = @transform_3, window_bounds = array<i64: 8, 512>}]} {
    %c0 = arith.constant 0 : index
    %c0_0 = arith.constant 0 : index
    %0 = vector.load %arg1[%c0, %c0_0] : memref<8x256xf32, #tpu.memory_space<vmem>>, vector<8x256xf32>
    %c0_1 = arith.constant 0 : index
    %c0_2 = arith.constant 0 : index
    %1 = vector.load %arg2[%c0_1, %c0_2] : memref<256x512xf32, #tpu.memory_space<vmem>>, vector<256x512xf32>
    %cst = arith.constant dense<0.000000e+00> : vector<8x512xf32>
    %2 = tpu.matmul %0, %1, %cst {dimension_numbers = #tpu.dot_dimension_numbers<[1], [0], [0], [1], [0, 0, 1, 1], [], []>} : vector<8x256xf32>, vector<256x512xf32>, vector<8x512xf32> -> vector<8x512xf32>
    %c0_3 = arith.constant 0 : index
    %c0_4 = arith.constant 0 : index
    %3 = vector.load %arg3[%c0_3, %c0_4] : memref<1x512xf32, #tpu.memory_space<vmem>>, vector<1x512xf32>
    %4 = vector.broadcast %3 : vector<1x512xf32> to vector<8x512xf32>
    %5 = arith.addf %2, %4 : vector<8x512xf32>
    %c0_5 = arith.constant 0 : index
    %c0_6 = arith.constant 0 : index
    %6 = vector.load %arg4[%c0_5, %c0_6] : memref<8x512xf32, #tpu.memory_space<vmem>>, vector<8x512xf32>
    tpu.vector_store %arg4[%c0_5, %c0_6], %5 {strides = array<i32>} : memref<8x512xf32, #tpu.memory_space<vmem>>, vector<8x512xf32>,
    return
  }
  func.func @transform_0(%arg0: i32) -> (i32, i32) {
    %c0_i32 = arith.constant 0 : i32
    %c0_i32_0 = arith.constant 0 : i32
    return %arg0, %c0_i32 : i32, i32
  }
  func.func @transform_1(%arg0: i32) -> (i32, i32) {
    %c0_i32 = arith.constant 0 : i32
    %c0_i32_0 = arith.constant 0 : i32
    %c0_i32_1 = arith.constant 0 : i32
    return %c0_i32, %c0_i32_0 : i32, i32
  }
  func.func @transform_2(%arg0: i32) -> (i32, i32) {
    %c0_i32 = arith.constant 0 : i32
    %c0_i32_0 = arith.constant 0 : i32
    %c0_i32_1 = arith.constant 0 : i32
    return %c0_i32, %c0_i32_0 : i32, i32
  }
  func.func @transform_3(%arg0: i32) -> (i32, i32) {
    %c0_i32 = arith.constant 0 : i32
    %c0_i32_0 = arith.constant 0 : i32
    return %arg0, %c0_i32 : i32, i32
  }
}

</mosaic_0001>

<llo_original>
// kernel: tile.8
$region0: #{tile.8}
  #allocation0 [shape = 's32[1]{0}', space=sflag, size = 0x4, scoped, tag = 'scoped memory for tile.8']
  %s0 = inlined_call_operand.vmem [shape: f32[32], index: 0, kind: input, shape index: {}]
  %s1 = inlined_call_operand.vmem [shape: f32[16,32], index: 1, kind: output, shape index: {}]
  // Predicated region
  $region2: #{tile.8} parent=0 // pred_check
    _
  $region3: #{tile.8} parent=0 // pred_check_branch
    %3 = sbr.rel (0) target = $region5
  $region4: #{tile.8} parent=0 // pred_region
    _
  $region5: #{tile.8} parent=0 // pred_fallthru
    _
  %v4 = vld [vmem:[%s0] ss:$0 sm:$0xff]
  %5 = vst [vmem:[%s1] sm:$0xff] %v4
  %s6 = scalar_lea.vmem %s1, 8
  %7 = vst [vmem:[%s6] sm:$0xff] %v4

// kernel: tile.9
$region0: #{tile.9}
  %s0 = inlined_call_operand.vmem [shape: f32[16,32], index: 0, kind: input, shape index: {}]
  %s1 = inlined_call_operand.vmem [shape: f32[1,512], index: 1, kind: output, shape index: {}]
  $region1: #{tile.9} parent=0
    #allocation0 [shape = 'u8[16384]{0}', space=vmem, size = 0x4000, scoped, tag = 'scoped mem for output reshape']
    %v2 = vld [vmem:[%s0] ss:$4 sm:$0xf]
    %vm3 = vcmask 261120
    %4 = vst.msk [vmem:[#allocation0] ss:$8 sm:$0xf] %vm3, %v2
    %s5 = scalar_lea.vmem %s0, 3
    %v6 = vld [vmem:[%s5] ss:$4 sm:$0xf]
    %7 = vrot.lane.b32.xlu0 %v6, 96
    %v8 = vpop.permute.xlu0 %7
    %vm9 = vcmask 1048320
    %10 = vst.msk [vmem:[#allocation0] ss:$8 sm:$0xf] %vm9, %v8
    %s11 = scalar_lea.vmem %s0, 2
    %v12 = vld [vmem:[%s11] ss:$4 sm:$0xf]
    %13 = vrot.lane.b32.xlu0 %v12, 64
    %v14 = vpop.permute.xlu0 %13
    %vm15 = vcmask 785920
    %16 = vst.msk [vmem:[#allocation0] ss:$8 sm:$0xf] %vm15, %v14
    %s17 = scalar_lea.vmem %s0, 1
    %v18 = vld [vmem:[%s17] ss:$4 sm:$0xf]
    %19 = vrot.lane.b32.xlu0 %v18, 32
    %v20 = vpop.permute.xlu0 %19
    %vm21 = vcmask 523520
    %22 = vst.msk [vmem:[#allocation0] ss:$8 sm:$0xf] %vm21, %v20
    %s24 = sshll.u32 1, 1
    %s25 = ssub.s32 %s24, 1
    %v27 = vld [vmem:[#allocation0] sm:%s25]
    %s28 = sshll.u32 1, 1
    %s29 = ssub.s32 %s28, 1
    %30 = vst [vmem:[%s1] sm:%s29] %v27
    %s31 = scalar_lea.vmem [#allocation0], 8
    %v32 = vld [vmem:[%s31] sm:%s25]
    %s33 = sshll.u32 1, 1
    %s34 = ssub.s32 %s33, 1
    %s35 = scalar_lea.vmem %s1, 1
    %36 = vst [vmem:[%s35] sm:%s34] %v32
    %s37 = scalar_lea.vmem [#allocation0], 16
    %v38 = vld [vmem:[%s37] sm:%s25]
    %s39 = sshll.u32 1, 1
    %s40 = ssub.s32 %s39, 1
    %s41 = smul.addr 1, 2
    %s42 = scalar_lea.vmem %s1, %s41
    %43 = vst [vmem:[%s42] sm:%s40] %v38
    %s44 = scalar_lea.vmem [#allocation0], 24
    %v45 = vld [vmem:[%s44] sm:%s25]
    %s46 = sshll.u32 1, 1
    %s47 = ssub.s32 %s46, 1
    %s48 = smul.addr 1, 3
    %s49 = scalar_lea.vmem %s1, %s48
    %50 = vst [vmem:[%s49] sm:%s47] %v45

// kernel: diffusion_graph_conv.1
$region0: #{diffusion_graph_conv.1}
  #allocation0 [shape = 'u32[]', space=smem, size = 0x4, offset = 0x4, fixed_abs, tag = 'smem constant byte address 0x4 - core index']
  #allocation1 [shape = 'u32[144,128]{1,0:T(1,128)}', space=vmem, size = 0x12000, scoped, tag = 'internal scratch']
  %s0 = inlined_call_operand.vmem [shape: f32[8,256], index: 0, kind: input, shape index: {}]
  %s1 = inlined_call_operand.vmem [shape: f32[256,512], index: 1, kind: input, shape index: {}]
  %s2 = inlined_call_operand.vmem [shape: f32[1,512], index: 2, kind: input, shape index: {}]
  %s3 = inlined_call_operand.vmem [shape: f32[8,512], index: 3, kind: output, shape index: {}]
  %s4 = sld [smem:[#allocation0]]
  $region22: #{diffusion_graph_conv.1} parent=0
    _
  %s6 = ssub.s32 1, %s4
  %s7 = scalar_select 0, %s6, %s4
  // Predicated region
  $region2: #{diffusion_graph_conv.1} parent=0 // pred_check
    _
  $region3: #{diffusion_graph_conv.1} parent=0 // pred_check_branch
    %9 = sbr.rel (0) target = $region5
  $region4: #{diffusion_graph_conv.1} parent=0 // pred_region
    _
  $region5: #{diffusion_graph_conv.1} parent=0 // pred_fallthru
    _
  // Predicated region
  $region6: #{diffusion_graph_conv.1} parent=0 // pred_check
    _
  $region7: #{diffusion_graph_conv.1} parent=0 // pred_check_branch
    %11 = sbr.rel (0) target = $region9
  $region8: #{diffusion_graph_conv.1} parent=0 // pred_region
    _
  $region9: #{diffusion_graph_conv.1} parent=0 // pred_fallthru
    _
  // Predicated region
  $region10: #{diffusion_graph_conv.1} parent=0 // pred_check
    _
  $region11: #{diffusion_graph_conv.1} parent=0 // pred_check_branch
    %13 = sbr.rel (0) target = $region13
  $region12: #{diffusion_graph_conv.1} parent=0 // pred_region
    _
  $region13: #{diffusion_graph_conv.1} parent=0 // pred_fallthru
    _
  %v14 = vld [vmem:[%s0] sm:$0xff]
  %v15 = vld [vmem:[%s0 + $0x8] sm:$0xff]
  %v16 = vld [vmem:[%s1] sm:$0xff]
  %v17 = vld [vmem:[%s1 + $0x8] sm:$0xff]
  %v18 = vld [vmem:[%s1 + $0x10] sm:$0xff]
  %v19 = vld [vmem:[%s1 + $0x18] sm:$0xff]
  %v20 = vld [vmem:[%s1 + $0x20] sm:$0xff]
  %v21 = vld [vmem:[%s1 + $0x28] sm:$0xff]
  %v22 = vld [vmem:[%s1 + $0x30] sm:$0xff]
  %v23 = vld [vmem:[%s1 + $0x38] sm:$0xff]
  %v24 = vld [vmem:[%s1 + $0x40] sm:$0xff]
  %v25 = vld [vmem:[%s1 + $0x48] sm:$0xff]
  %v26 = vld [vmem:[%s1 + $0x50] sm:$0xff]
  %v27 = vld [vmem:[%s1 + $0x58] sm:$0xff]
  %v28 = vld [vmem:[%s1 + $0x60] sm:$0xff]
  %v29 = vld [vmem:[%s1 + $0x68] sm:$0xff]
  %v30 = vld [vmem:[%s1 + $0x70] sm:$0xff]
  %v31 = vld [vmem:[%s1 + $0x78] sm:$0xff]
  %v32 = vld [vmem:[%s1 + $0x80] sm:$0xff]
  %v33 = vld [vmem:[%s1 + $0x88] sm:$0xff]
  %v34 = vld [vmem:[%s1 + $0x90] sm:$0xff]
  %v35 = vld [vmem:[%s1 + $0x98] sm:$0xff]
  %v36 = vld [vmem:[%s1 + $0xa0] sm:$0xff]
  %v37 = vld [vmem:[%s1 + $0xa8] sm:$0xff]
  %v38 = vld [vmem:[%s1 + $0xb0] sm:$0xff]
  %v39 = vld [vmem:[%s1 + $0xb8] sm:$0xff]
  %v40 = vld [vmem:[%s1 + $0xc0] sm:$0xff]
  %v41 = vld [vmem:[%s1 + $0xc8] sm:$0xff]
  %v42 = vld [vmem:[%s1 + $0xd0] sm:$0xff]
  %v43 = vld [vmem:[%s1 + $0xd8] sm:$0xff]
  %v44 = vld [vmem:[%s1 + $0xe0] sm:$0xff]
  %v45 = vld [vmem:[%s1 + $0xe8] sm:$0xff]
  %v46 = vld [vmem:[%s1 + $0xf0] sm:$0xff]
  %v47 = vld [vmem:[%s1 + $0xf8] sm:$0xff]
  %v48 = vld [vmem:[%s1 + $0x100] sm:$0xff]
  %v49 = vld [vmem:[%s1 + $0x108] sm:$0xff]
  %v50 = vld [vmem:[%s1 + $0x110] sm:$0xff]
  %v51 = vld [vmem:[%s1 + $0x118] sm:$0xff]
  %v52 = vld [vmem:[%s1 + $0x120] sm:$0xff]
  %v53 = vld [vmem:[%s1 + $0x128] sm:$0xff]
  %v54 = vld [vmem:[%s1 + $0x130] sm:$0xff]
  %v55 = vld [vmem:[%s1 + $0x138] sm:$0xff]
  %v56 = vld [vmem:[%s1 + $0x140] sm:$0xff]
  %v57 = vld [vmem:[%s1 + $0x148] sm:$0xff]
  %v58 = vld [vmem:[%s1 + $0x150] sm:$0xff]
  %v59 = vld [vmem:[%s1 + $0x158] sm:$0xff]
  %v60 = vld [vmem:[%s1 + $0x160] sm:$0xff]
  %v61 = vld [vmem:[%s1 + $0x168] sm:$0xff]
  %v62 = vld [vmem:[%s1 + $0x170] sm:$0xff]
  %v63 = vld [vmem:[%s1 + $0x178] sm:$0xff]
  %v64 = vld [vmem:[%s1 + $0x180] sm:$0xff]
  %v65 = vld [vmem:[%s1 + $0x188] sm:$0xff]
  %v66 = vld [vmem:[%s1 + $0x190] sm:$0xff]
  %v67 = vld [vmem:[%s1 + $0x198] sm:$0xff]
  %v68 = vld [vmem:[%s1 + $0x1a0] sm:$0xff]
  %v69 = vld [vmem:[%s1 + $0x1a8] sm:$0xff]
  %v70 = vld [vmem:[%s1 + $0x1b0] sm:$0xff]
  %v71 = vld [vmem:[%s1 + $0x1b8] sm:$0xff]
  %v72 = vld [vmem:[%s1 + $0x1c0] sm:$0xff]
  %v73 = vld [vmem:[%s1 + $0x1c8] sm:$0xff]
  %v74 = vld [vmem:[%s1 + $0x1d0] sm:$0xff]
  %v75 = vld [vmem:[%s1 + $0x1d8] sm:$0xff]
  %v76 = vld [vmem:[%s1 + $0x1e0] sm:$0xff]
  %v77 = vld [vmem:[%s1 + $0x1e8] sm:$0xff]
  %v78 = vld [vmem:[%s1 + $0x1f0] sm:$0xff]
  %v79 = vld [vmem:[%s1 + $0x1f8] sm:$0xff]
  %v80 = vld [vmem:[%s1 + $0x200] sm:$0xff]
  %v81 = vld [vmem:[%s1 + $0x208] sm:$0xff]
  %v82 = vld [vmem:[%s1 + $0x210] sm:$0xff]
  %v83 = vld [vmem:[%s1 + $0x218] sm:$0xff]
  %v84 = vld [vmem:[%s1 + $0x220] sm:$0xff]
  %v85 = vld [vmem:[%s1 + $0x228] sm:$0xff]
  %v86 = vld [vmem:[%s1 + $0x230] sm:$0xff]
  %v87 = vld [vmem:[%s1 + $0x238] sm:$0xff]
  %v88 = vld [vmem:[%s1 + $0x240] sm:$0xff]
  %v89 = vld [vmem:[%s1 + $0x248] sm:$0xff]
  %v90 = vld [vmem:[%s1 + $0x250] sm:$0xff]
  %v91 = vld [vmem:[%s1 + $0x258] sm:$0xff]
  %v92 = vld [vmem:[%s1 + $0x260] sm:$0xff]
  %v93 = vld [vmem:[%s1 + $0x268] sm:$0xff]
  %v94 = vld [vmem:[%s1 + $0x270] sm:$0xff]
  %v95 = vld [vmem:[%s1 + $0x278] sm:$0xff]
  %v96 = vld [vmem:[%s1 + $0x280] sm:$0xff]
  %v97 = vld [vmem:[%s1 + $0x288] sm:$0xff]
  %v98 = vld [vmem:[%s1 + $0x290] sm:$0xff]
  %v99 = vld [vmem:[%s1 + $0x298] sm:$0xff]
  %v100 = vld [vmem:[%s1 + $0x2a0] sm:$0xff]
  %v101 = vld [vmem:[%s1 + $0x2a8] sm:$0xff]
  %v102 = vld [vmem:[%s1 + $0x2b0] sm:$0xff]
  %v103 = vld [vmem:[%s1 + $0x2b8] sm:$0xff]
  %v104 = vld [vmem:[%s1 + $0x2c0] sm:$0xff]
  %v105 = vld [vmem:[%s1 + $0x2c8] sm:$0xff]
  %v106 = vld [vmem:[%s1 + $0x2d0] sm:$0xff]
  %v107 = vld [vmem:[%s1 + $0x2d8] sm:$0xff]
  %v108 = vld [vmem:[%s1 + $0x2e0] sm:$0xff]
  %v109 = vld [vmem:[%s1 + $0x2e8] sm:$0xff]
  %v110 = vld [vmem:[%s1 + $0x2f0] sm:$0xff]
  %v111 = vld [vmem:[%s1 + $0x2f8] sm:$0xff]
  %v112 = vld [vmem:[%s1 + $0x300] sm:$0xff]
  %v113 = vld [vmem:[%s1 + $0x308] sm:$0xff]
  %v114 = vld [vmem:[%s1 + $0x310] sm:$0xff]
  %v115 = vld [vmem:[%s1 + $0x318] sm:$0xff]
  %v116 = vld [vmem:[%s1 + $0x320] sm:$0xff]
  %v117 = vld [vmem:[%s1 + $0x328] sm:$0xff]
  %v118 = vld [vmem:[%s1 + $0x330] sm:$0xff]
  %v119 = vld [vmem:[%s1 + $0x338] sm:$0xff]
  %v120 = vld [vmem:[%s1 + $0x340] sm:$0xff]
  %v121 = vld [vmem:[%s1 + $0x348] sm:$0xff]
  %v122 = vld [vmem:[%s1 + $0x350] sm:$0xff]
  %v123 = vld [vmem:[%s1 + $0x358] sm:$0xff]
  %v124 = vld [vmem:[%s1 + $0x360] sm:$0xff]
  %v125 = vld [vmem:[%s1 + $0x368] sm:$0xff]
  %v126 = vld [vmem:[%s1 + $0x370] sm:$0xff]
  %v127 = vld [vmem:[%s1 + $0x378] sm:$0xff]
  %v128 = vld [vmem:[%s1 + $0x380] sm:$0xff]
  %v129 = vld [vmem:[%s1 + $0x388] sm:$0xff]
  %v130 = vld [vmem:[%s1 + $0x390] sm:$0xff]
  %v131 = vld [vmem:[%s1 + $0x398] sm:$0xff]
  %v132 = vld [vmem:[%s1 + $0x3a0] sm:$0xff]
  %v133 = vld [vmem:[%s1 + $0x3a8] sm:$0xff]
  %v134 = vld [vmem:[%s1 + $0x3b0] sm:$0xff]
  %v135 = vld [vmem:[%s1 + $0x3b8] sm:$0xff]
  %v136 = vld [vmem:[%s1 + $0x3c0] sm:$0xff]
  %v137 = vld [vmem:[%s1 + $0x3c8] sm:$0xff]
  %v138 = vld [vmem:[%s1 + $0x3d0] sm:$0xff]
  %v139 = vld [vmem:[%s1 + $0x3d8] sm:$0xff]
  %v140 = vld [vmem:[%s1 + $0x3e0] sm:$0xff]
  %v141 = vld [vmem:[%s1 + $0x3e8] sm:$0xff]
  %v142 = vld [vmem:[%s1 + $0x3f0] sm:$0xff]
  %v143 = vld [vmem:[%s1 + $0x3f8] sm:$0xff]
  %v144 = vld [vmem:[%s2] sm:$0xf]
  %v146 = vlaneseq
  %v147 = vshrl.u32 %v146, 7
  %v148 = vsub.s32 0, %v147
  %v149 = vrot.slane %v144, %v148
  %v150 = vlaneseq
  %v151 = vshrl.u32 %v150, 7
  %v152 = vsub.s32 1, %v151
  %v153 = vrot.slane %v144, %v152
  %v154 = vlaneseq
  %v155 = vshrl.u32 %v154, 7
  %v156 = vsub.s32 2, %v155
  %v157 = vrot.slane %v144, %v156
  %v158 = vlaneseq
  %v159 = vshrl.u32 %v158, 7
  %v160 = vsub.s32 3, %v159
  %v161 = vrot.slane %v144, %v160
  %166 = vmatprep.subr.mxu0 %v77
  %167 = vmatpush1.msra.mxu0 %v76
  %168 = vmatprep.subr.mxu0 %v73
  %169 = vmatpush1.msra.mxu0 %v72
  %170 = vmatprep.subr.mxu0 %v69
  %171 = vmatpush1.msra.mxu0 %v68
  %172 = vmatprep.subr.mxu0 %v65
  %173 = vmatpush1.msra.mxu0 %v64
  %174 = vmatprep.subr.mxu0 %v61
  %175 = vmatpush1.msra.mxu0 %v60
  %176 = vmatprep.subr.mxu0 %v57
  %177 = vmatpush1.msra.mxu0 %v56
  %178 = vmatprep.subr.mxu0 %v53
  %179 = vmatpush1.msra.mxu0 %v52
  %180 = vmatprep.subr.mxu0 %v49
  %181 = vmatpush1.msra.mxu0 %v48
  %182 = vmatprep.subr.mxu0 %v45
  %183 = vmatpush1.msra.mxu0 %v44
  %184 = vmatprep.subr.mxu0 %v41
  %185 = vmatpush1.msra.mxu0 %v40
  %186 = vmatprep.subr.mxu0 %v37
  %187 = vmatpush1.msra.mxu0 %v36
  %188 = vmatprep.subr.mxu0 %v33
  %189 = vmatpush1.msra.mxu0 %v32
  %190 = vmatprep.subr.mxu0 %v29
  %191 = vmatpush1.msra.mxu0 %v28
  %192 = vmatprep.subr.mxu0 %v25
  %193 = vmatpush1.msra.mxu0 %v24
  %194 = vmatprep.subr.mxu0 %v21
  %195 = vmatpush1.msra.mxu0 %v20
  %196 = vmatprep.subr.mxu0 %v17
  %197 = vmatpush1.msra.mxu0 %v16
  %198 = vmatprep.subr.mxu0 %v141
  %199 = vmatpush2.msra.mxu0 %v140
  %200 = vmatprep.subr.mxu0 %v137
  %201 = vmatpush2.msra.mxu0 %v136
  %202 = vmatprep.subr.mxu0 %v133
  %203 = vmatpush2.msra.mxu0 %v132
  %204 = vmatprep.subr.mxu0 %v129
  %205 = vmatpush2.msra.mxu0 %v128
  %206 = vmatprep.subr.mxu0 %v125
  %207 = vmatpush2.msra.mxu0 %v124
  %208 = vmatprep.subr.mxu0 %v121
  %209 = vmatpush2.msra.mxu0 %v120
  %210 = vmatprep.subr.mxu0 %v117
  %211 = vmatpush2.msra.mxu0 %v116
  %212 = vmatprep.subr.mxu0 %v113
  %213 = vmatpush2.msra.mxu0 %v112
  %214 = vmatprep.subr.mxu0 %v109
  %215 = vmatpush2.msra.mxu0 %v108
  %216 = vmatprep.subr.mxu0 %v105
  %217 = vmatpush2.msra.mxu0 %v104
  %218 = vmatprep.subr.mxu0 %v101
  %219 = vmatpush2.msra.mxu0 %v100
  %220 = vmatprep.subr.mxu0 %v97
  %221 = vmatpush2.msra.mxu0 %v96
  %222 = vmatprep.subr.mxu0 %v93
  %223 = vmatpush2.msra.mxu0 %v92
  %224 = vmatprep.subr.mxu0 %v89
  %225 = vmatpush2.msra.mxu0 %v88
  %226 = vmatprep.subr.mxu0 %v85
  %227 = vmatpush2.msra.mxu0 %v84
  %228 = vmatprep.subr.mxu0 %v81
  %229 = vmatpush2.msra.mxu0 %v80
  %230 = vmatprep.mubr.f32.mxu0 %v15
  %231 = vmatmul.mubr.f32.gmra.mxu0 %v14
  %v232 = vpop.f32.mrf.mxu0
  %v233 = vadd.f32 %v149, %v232
  %v234 = vpop.f32.mrf.mxu0
  %v235 = vadd.f32 %v153, %v234
  %236 = vdwg.mxu0
  %237 = vmatprep.subr.mxu0 %v79
  %238 = vmatpush1.msra.mxu0 %v78
  %239 = vmatprep.subr.mxu0 %v75
  %240 = vmatpush1.msra.mxu0 %v74
  %241 = vmatprep.subr.mxu0 %v71
  %242 = vmatpush1.msra.mxu0 %v70
  %243 = vmatprep.subr.mxu0 %v67
  %244 = vmatpush1.msra.mxu0 %v66
  %245 = vmatprep.subr.mxu0 %v63
  %246 = vmatpush1.msra.mxu0 %v62
  %247 = vmatprep.subr.mxu0 %v59
  %248 = vmatpush1.msra.mxu0 %v58
  %249 = vmatprep.subr.mxu0 %v55
  %250 = vmatpush1.msra.mxu0 %v54
  %251 = vmatprep.subr.mxu0 %v51
  %252 = vmatpush1.msra.mxu0 %v50
  %253 = vmatprep.subr.mxu0 %v47
  %254 = vmatpush1.msra.mxu0 %v46
  %255 = vmatprep.subr.mxu0 %v43
  %256 = vmatpush1.msra.mxu0 %v42
  %257 = vmatprep.subr.mxu0 %v39
  %258 = vmatpush1.msra.mxu0 %v38
  %259 = vmatprep.subr.mxu0 %v35
  %260 = vmatpush1.msra.mxu0 %v34
  %261 = vmatprep.subr.mxu0 %v31
  %262 = vmatpush1.msra.mxu0 %v30
  %263 = vmatprep.subr.mxu0 %v27
  %264 = vmatpush1.msra.mxu0 %v26
  %265 = vmatprep.subr.mxu0 %v23
  %266 = vmatpush1.msra.mxu0 %v22
  %267 = vmatprep.subr.mxu0 %v19
  %268 = vmatpush1.msra.mxu0 %v18
  %269 = vmatprep.subr.mxu0 %v143
  %270 = vmatpush2.msra.mxu0 %v142
  %271 = vmatprep.subr.mxu0 %v139
  %272 = vmatpush2.msra.mxu0 %v138
  %273 = vmatprep.subr.mxu0 %v135
  %274 = vmatpush2.msra.mxu0 %v134
  %275 = vmatprep.subr.mxu0 %v131
  %276 = vmatpush2.msra.mxu0 %v130
  %277 = vmatprep.subr.mxu0 %v127
  %278 = vmatpush2.msra.mxu0 %v126
  %279 = vmatprep.subr.mxu0 %v123
  %280 = vmatpush2.msra.mxu0 %v122
  %281 = vmatprep.subr.mxu0 %v119
  %282 = vmatpush2.msra.mxu0 %v118
  %283 = vmatprep.subr.mxu0 %v115
  %284 = vmatpush2.msra.mxu0 %v114
  %285 = vmatprep.subr.mxu0 %v111
  %286 = vmatpush2.msra.mxu0 %v110
  %287 = vmatprep.subr.mxu0 %v107
  %288 = vmatpush2.msra.mxu0 %v106
  %289 = vmatprep.subr.mxu0 %v103
  %290 = vmatpush2.msra.mxu0 %v102
  %291 = vmatprep.subr.mxu0 %v99
  %292 = vmatpush2.msra.mxu0 %v98
  %293 = vmatprep.subr.mxu0 %v95
  %294 = vmatpush2.msra.mxu0 %v94
  %295 = vmatprep.subr.mxu0 %v91
  %296 = vmatpush2.msra.mxu0 %v90
  %297 = vmatprep.subr.mxu0 %v87
  %298 = vmatpush2.msra.mxu0 %v86
  %299 = vmatprep.subr.mxu0 %v83
  %300 = vmatpush2.msra.mxu0 %v82
  %301 = vmatprep.mubr.f32.mxu0 %v15
  %302 = vmatmul.mubr.f32.gmra.mxu0 %v14
  %v303 = vpop.f32.mrf.mxu0
  %v304 = vadd.f32 %v157, %v303
  %v305 = vpop.f32.mrf.mxu0
  %v306 = vadd.f32 %v161, %v305
  %307 = vdwg.mxu0
  %308 = vst [vmem:[%s3] sm:$0xff] %v233
  %309 = vst [vmem:[%s3 + $0x8] sm:$0xff] %v235
  %310 = vst [vmem:[%s3 + $0x10] sm:$0xff] %v304
  %311 = vst [vmem:[%s3 + $0x18] sm:$0xff] %v306
  // Predicated region
  $region14: #{diffusion_graph_conv.1} parent=0 // pred_check
    _
  $region15: #{diffusion_graph_conv.1} parent=0 // pred_check_branch
    %313 = sbr.rel (0) target = $region17
  $region16: #{diffusion_graph_conv.1} parent=0 // pred_region
    _
  $region17: #{diffusion_graph_conv.1} parent=0 // pred_fallthru
    _
  // Predicated region
  $region18: #{diffusion_graph_conv.1} parent=0 // pred_check
    _
  $region19: #{diffusion_graph_conv.1} parent=0 // pred_check_branch
    %315 = sbr.rel (0) target = $region21
  $region20: #{diffusion_graph_conv.1} parent=0 // pred_region
    _
  $region21: #{diffusion_graph_conv.1} parent=0 // pred_fallthru
    _

</llo_original>
